<compile_context>
chip_gen: v6e
topology: v6e:2x2x1
jax: 0.10.0
libtpu: 0.0.40
codegen_flags: <defaults>
</compile_context>

<pallas_src>
import functools

import jax
import jax.numpy as jnp
from jax.experimental import pallas as pl
from jax.experimental.pallas import tpu as pltpu


# ----------------------------------------------------------------------------
# helpers
# ----------------------------------------------------------------------------

def _compiler_params(dimension_semantics):
    vmem = None
    try:
        cap = pltpu.get_tpu_info().vmem_capacity_bytes
        # leave headroom; v7x has 64 MiB, v5e/v6e 128 MiB.
        vmem = int(min(cap * 3 // 4, 100 * 1024 * 1024))
    except Exception:
        vmem = None
    return pltpu.CompilerParams(dimension_semantics=dimension_semantics,
                                vmem_limit_bytes=vmem)


def _const_spec(a):
    """Full-array block with a constant index_map -> stays VMEM-resident across steps."""
    return pl.BlockSpec(a.shape, lambda *_args, _n=a.ndim: (0,) * _n)


def _layernorm(x, gamma, beta, eps):
    mu = jnp.mean(x, axis=-1, keepdims=True)
    d = x - mu
    var = jnp.mean(d * d, axis=-1, keepdims=True)
    return d * jax.lax.rsqrt(var + eps) * gamma + beta


def _gelu_tanh(x):
    # TODO(synk): timm's nn.GELU is exact erf-GELU; tanh approximation used here
    # (no guaranteed erf lowering in-kernel); max abs diff ~3e-4.
    c = 0.7978845608028654  # sqrt(2/pi)
    x3 = x * x * x
    return 0.5 * x * (1.0 + jnp.tanh(c * (x + 0.044715 * x3)))


# ----------------------------------------------------------------------------
# Patch embedding kernel: matmul + bias + CLS insertion + pos-embed add, fused.
#   patches arrive with a leading all-zero row per batch, so row 0 of the matmul
#   output is exactly the bias; cls_pos[0] = pos[0] + cls - bias restores the CLS row.
# ----------------------------------------------------------------------------

def _patch_embed_kernel(p_ref, w_ref, b_ref, clspos_ref, o_ref):
    f32 = jnp.float32
    tok = jnp.dot(p_ref[0], w_ref[...], preferred_element_type=f32)       # [S, E]
    o_ref[0] = (tok + b_ref[...].astype(f32)
                + clspos_ref[...].astype(f32)).astype(o_ref.dtype)


def patch_embed(x, params, *, patch, embed_dim):
    B, C, H, W = x.shape
    Hp, Wp = H // patch, W // patch
    Np = Hp * Wp
    S = Np + 1
    patch_dim = C * patch * patch

    # TODO(synk): fold the unfold (NCHW -> patch rows) into the kernel via an
    # index_map / manual DMA gather; here it stays plain-JAX glue.
    patches = x.reshape(B, C, Hp, patch, Wp, patch)
    patches = patches.transpose(0, 2, 4, 1, 3, 5).reshape(B, Np, patch_dim)
    patches = jnp.concatenate(
        [jnp.zeros((B, 1, patch_dim), patches.dtype), patches], axis=1)   # [B, S, pd]
    patches = patches.astype(jnp.bfloat16)                                # halve DMA bytes

    w, b = params["patch_w"], params["patch_b"]
    # cls_pos: pos with row 0 adjusted so the zero patch row turns into cls + pos[0].
    cls_pos = params["pos"].at[0:1].add(params["cls"] - b)                # [S, E] f32

    cost = pl.CostEstimate(
        flops=int(2 * B * S * patch_dim * embed_dim),
        transcendentals=0,
        bytes_accessed=int(patches.size * patches.dtype.itemsize
                           + w.size * w.dtype.itemsize
                           + B * S * embed_dim * 4))
    return pl.pallas_call(
        _patch_embed_kernel,
        out_shape=jax.ShapeDtypeStruct((B, S, embed_dim), jnp.float32),
        grid=(B,),
        in_specs=[pl.BlockSpec((1, S, patch_dim), lambda bb: (bb, 0, 0)),
                  _const_spec(w), _const_spec(b), _const_spec(cls_pos)],
        out_specs=pl.BlockSpec((1, S, embed_dim), lambda bb: (bb, 0, 0)),
        compiler_params=_compiler_params(("parallel",)),
        cost_estimate=cost,
    )(patches, w, b, cls_pos)


# ----------------------------------------------------------------------------
# Fully fused transformer block kernel (one batch element per grid step).
#   Weights (VMEM-resident):
#     qkv_w  [3, H, E, Dh]   (Q slice pre-scaled by Dh^-0.5)
#     qkv_b  [3, H, 1, Dh]
#     proj_w [H, Dh, E]      proj_b [1, E]
#     fc1_w  [E, 4E]         fc1_b  [1, 4E]
#     fc2_w  [4E, E]         fc2_b  [1, E]
# ----------------------------------------------------------------------------

def _block_kernel(h_ref, ln1g_ref, ln1b_ref, qkvw_ref, qkvb_ref,
                  projw_ref, projb_ref, ln2g_ref, ln2b_ref,
                  fc1w_ref, fc1b_ref, fc2w_ref, fc2b_ref, o_ref,
                  *, num_heads, eps):
    f32 = jnp.float32
    bf16 = jnp.bfloat16
    x = h_ref[0].astype(f32)                                              # [S, E]

    # ---- LN1: computed once, reused for every head's Q/K/V matmul ----
    xn = _layernorm(x, ln1g_ref[...].astype(f32), ln1b_ref[...].astype(f32), eps)
    xn_b = xn.astype(bf16)

    # ---- MHSA: per-head matmuls against pre-permuted weight slices; the per-head
    #      output is folded straight into the output projection (no concat). ----
    acc = None
    for h in range(num_heads):                                            # static unroll
        q = jnp.dot(xn_b, qkvw_ref[0, h], preferred_element_type=f32) \
            + qkvb_ref[0, h].astype(f32)                                  # [S, Dh] (scaled)
        k = jnp.dot(xn_b, qkvw_ref[1, h], preferred_element_type=f32) \
            + qkvb_ref[1, h].astype(f32)
        v = jnp.dot(xn_b, qkvw_ref[2, h], preferred_element_type=f32) \
            + qkvb_ref[2, h].astype(f32)
        s = jax.lax.dot_general(q.astype(bf16), k.astype(bf16),
                                (((1,), (1,)), ((), ())),
                                preferred_element_type=f32)               # [S, S]
        m = jnp.max(s, axis=-1, keepdims=True)
        p = jnp.exp(s - m)
        l = jnp.sum(p, axis=-1, keepdims=True)
        oh = jnp.dot(p.astype(bf16), v.astype(bf16),
                     preferred_element_type=f32)                          # [S, Dh]
        oh = oh / l                                                       # exact softmax norm
        contrib = jnp.dot(oh.astype(bf16), projw_ref[h],
                          preferred_element_type=f32)                     # [S, E]
        acc = contrib if acc is None else acc + contrib

    h1 = x + acc + projb_ref[...].astype(f32)                             # residual 1

    # ---- LN2 + MLP ----
    x2 = _layernorm(h1, ln2g_ref[...].astype(f32), ln2b_ref[...].astype(f32), eps)
    y = jnp.dot(x2.astype(bf16), fc1w_ref[...], preferred_element_type=f32) \
        + fc1b_ref[...].astype(f32)                                       # [S, 4E]
    y = _gelu_tanh(y)
    h2 = h1 + jnp.dot(y.astype(bf16), fc2w_ref[...], preferred_element_type=f32) \
        + fc2b_ref[...].astype(f32)                                       # residual 2

    o_ref[0] = h2.astype(o_ref.dtype)


def vit_block(h, blk, *, num_heads, eps=1e-6):
    B, S, E = h.shape
    Dh = E // num_heads
    hidden = blk["fc1_w"].shape[1]
    weights = [blk["ln1_g"], blk["ln1_b"], blk["qkv_w"], blk["qkv_b"],
               blk["proj_w"], blk["proj_b"], blk["ln2_g"], blk["ln2_b"],
               blk["fc1_w"], blk["fc1_b"], blk["fc2_w"], blk["fc2_b"]]
    kern = functools.partial(_block_kernel, num_heads=num_heads, eps=eps)

    flops = (2 * B * S * E * 3 * E            # qkv
             + 4 * B * num_heads * S * S * Dh  # scores + pv
             + 2 * B * S * E * E               # proj
             + 4 * B * S * E * hidden)         # fc1 + fc2
    cost = pl.CostEstimate(
        flops=int(flops),
        transcendentals=int(B * num_heads * S * S + B * S * hidden),
        bytes_accessed=int(2 * h.size * h.dtype.itemsize
                           + sum(w.size * w.dtype.itemsize for w in weights)))

    return pl.pallas_call(
        kern,
        out_shape=jax.ShapeDtypeStruct((B, S, E), jnp.float32),
        grid=(B,),
        in_specs=[pl.BlockSpec((1, S, E), lambda bb: (bb, 0, 0))]
                 + [_const_spec(w) for w in weights],
        out_specs=pl.BlockSpec((1, S, E), lambda bb: (bb, 0, 0)),
        compiler_params=_compiler_params(("parallel",)),
        cost_estimate=cost,
    )(h, *weights)


# ----------------------------------------------------------------------------
# Final LayerNorm on the CLS rows only (LN is row-wise, so it commutes with pooling).
# ----------------------------------------------------------------------------

def _cls_norm_kernel(h_ref, g_ref, b_ref, o_ref, *, eps):
    f32 = jnp.float32
    x = h_ref[...][:, 0, :].astype(f32)                                   # [B, E]
    o_ref[...] = _layernorm(x, g_ref[...].astype(f32),
                            b_ref[...].astype(f32), eps).astype(o_ref.dtype)


def cls_layernorm(h, gamma, beta, eps=1e-6):
    B, S, E = h.shape
    kern = functools.partial(_cls_norm_kernel, eps=eps)
    return pl.pallas_call(
        kern,
        out_shape=jax.ShapeDtypeStruct((B, E), jnp.float32),
        grid=(1,),
        in_specs=[pl.BlockSpec((B, S, E), lambda i: (0, 0, 0)),
                  _const_spec(gamma), _const_spec(beta)],
        out_specs=pl.BlockSpec((B, E), lambda i: (0, 0)),
    )(h, gamma, beta)


# ----------------------------------------------------------------------------
# Parameter construction (deterministic, synthetic; bf16 weights in kernel-friendly layout)
# ----------------------------------------------------------------------------

def init_vit_params(key, *, in_chans, patch, embed_dim, depth, num_heads, mlp_ratio,
                    num_patches, w_dtype=jnp.bfloat16, dtype=jnp.float32):
    patch_dim = in_chans * patch * patch
    hidden = embed_dim * mlp_ratio
    Dh = embed_dim // num_heads
    scale = Dh ** -0.5
    S = num_patches + 1

    def normal(k, shape, std=0.02):
        return std * jax.random.normal(k, shape, dtype=jnp.float32)

    keys = jax.random.split(key, 4 + depth)
    params = {
        "patch_w": normal(keys[0], (patch_dim, embed_dim)).astype(w_dtype),
        "patch_b": jnp.zeros((1, embed_dim), dtype),
        "cls": normal(keys[1], (1, embed_dim)).astype(dtype),
        "pos": normal(keys[2], (S, embed_dim)).astype(dtype),
        "ln_g": jnp.ones((1, embed_dim), dtype),
        "ln_b": jnp.zeros((1, embed_dim), dtype),
        "blocks": [],
    }
    for d in range(depth):
        bk = jax.random.split(keys[4 + d], 4)
        # qkv weights generated directly in the permuted layout [3, H, E, Dh]
        # (equivalent to a timm [E, 3E] weight reshaped to [E, 3, H, Dh] and transposed).
        qkv_w = normal(bk[0], (3, num_heads, embed_dim, Dh))
        qkv_b = jnp.zeros((3, num_heads, 1, Dh), jnp.float32)
        # Fold the attention scale into the Q slice (in f32, before the bf16 cast).
        qkv_w = qkv_w.at[0].multiply(scale)
        qkv_b = qkv_b.at[0].multiply(scale)
        params["blocks"].append({
            "ln1_g": jnp.ones((1, embed_dim), dtype),
            "ln1_b": jnp.zeros((1, embed_dim), dtype),
            "qkv_w": qkv_w.astype(w_dtype),
            "qkv_b": qkv_b.astype(dtype),
            "proj_w": normal(bk[1], (num_heads, Dh, embed_dim)).astype(w_dtype),
            "proj_b": jnp.zeros((1, embed_dim), dtype),
            "ln2_g": jnp.ones((1, embed_dim), dtype),
            "ln2_b": jnp.zeros((1, embed_dim), dtype),
            "fc1_w": normal(bk[2], (embed_dim, hidden)).astype(w_dtype),
            "fc1_b": jnp.zeros((1, hidden), dtype),
            "fc2_w": normal(bk[3], (hidden, embed_dim)).astype(w_dtype),
            "fc2_b": jnp.zeros((1, embed_dim), dtype),
        })
    return params


# ----------------------------------------------------------------------------
# ViT encoder forward (head stripped -> returns normed CLS token, [B, embed_dim])
# ----------------------------------------------------------------------------

def vit_encoder_forward(x, params, *, patch, embed_dim, num_heads):
    h = patch_embed(x, params, patch=patch, embed_dim=embed_dim)          # [B, S, E] f32
    for blk in params["blocks"]:
        h = vit_block(h, blk, num_heads=num_heads)                        # fused block
    return cls_layernorm(h, params["ln_g"], params["ln_b"])               # [B, E]


# ----------------------------------------------------------------------------
# Main
# ----------------------------------------------------------------------------

if __name__ == "__main__":
    # Small-scale config consistent with the ViT forward (real model: 224/16/768/12/12).
    B, C, IMG = 2, 3, 32
    PATCH = 16
    EMBED = 32
    DEPTH = 2
    HEADS = 4
    MLP_RATIO = 4
    N_PATCHES = (IMG // PATCH) ** 2

    key = jax.random.PRNGKey(0)
    k_x, k_p = jax.random.split(key)
    x = jax.random.normal(k_x, (B, C, IMG, IMG), dtype=jnp.float32)  # NCHW, like PyTorch

    params = init_vit_params(
        k_p, in_chans=C, patch=PATCH, embed_dim=EMBED, depth=DEPTH,
        num_heads=HEADS, mlp_ratio=MLP_RATIO, num_patches=N_PATCHES,
    )

    feats = vit_encoder_forward(x, params, patch=PATCH, embed_dim=EMBED, num_heads=HEADS)
    feats = jax.block_until_ready(feats)

    assert feats.shape == (B, EMBED), feats.shape
    assert bool(jnp.all(jnp.isfinite(feats)))
    print("KERNEL_OK")
</pallas_src>

<mosaic_0001>
module attributes {stable_mosaic.version = 11 : i64} {
  func.func @_patch_embed_kernel(%arg0: i32, %arg1: memref<1x5x768xbf16, #tpu.memory_space<vmem>>, %arg2: memref<768x32xbf16, #tpu.memory_space<vmem>>, %arg3: memref<1x32xf32, #tpu.memory_space<vmem>>, %arg4: memref<5x32xf32, #tpu.memory_space<vmem>>, %arg5: memref<1x5x32xf32, #tpu.memory_space<vmem>>) attributes {dimension_semantics = [#tpu.dimension_semantics<parallel>], iteration_bounds = array<i64: 2>, scalar_prefetch = 0 : i64, scratch_operands = 0 : i64, tpu.core_type = #tpu.core_type<tc>, window_params = [{transform_indices = @transform_0, window_bounds = array<i64: 1, 5, 768>}, {pipeline_mode = #tpu.pipeline_mode<synchronous>, transform_indices = @transform_1, window_bounds = array<i64: 768, 32>}, {pipeline_mode = #tpu.pipeline_mode<synchronous>, transform_indices = @transform_2, window_bounds = array<i64: 1, 32>}, {pipeline_mode = #tpu.pipeline_mode<synchronous>, transform_indices = @transform_3, window_bounds = array<i64: 5, 32>}, {transform_indices = @transform_4, window_bounds = array<i64: 1, 5, 32>}]} {
    %c0 = arith.constant 0 : index
    %c0_0 = arith.constant 0 : index
    %c0_1 = arith.constant 0 : index
    %0 = vector.load %arg1[%c0, %c0_0, %c0_1] : memref<1x5x768xbf16, #tpu.memory_space<vmem>>, vector<1x5x768xbf16>
    %1 = vector.shape_cast %0 : vector<1x5x768xbf16> to vector<5x768xbf16>
    %c0_2 = arith.constant 0 : index
    %c0_3 = arith.constant 0 : index
    %2 = vector.load %arg2[%c0_2, %c0_3] : memref<768x32xbf16, #tpu.memory_space<vmem>>, vector<768x32xbf16>
    %cst = arith.constant dense<0.000000e+00> : vector<5x32xf32>
    %3 = tpu.matmul %1, %2, %cst {dimension_numbers = #tpu.dot_dimension_numbers<[1], [0], [0], [1], [0, 0, 1, 1], [], []>} : vector<5x768xbf16>, vector<768x32xbf16>, vector<5x32xf32> -> vector<5x32xf32>
    %c0_4 = arith.constant 0 : index
    %c0_5 = arith.constant 0 : index
    %4 = vector.load %arg3[%c0_4, %c0_5] : memref<1x32xf32, #tpu.memory_space<vmem>>, vector<1x32xf32>
    %5 = vector.broadcast %4 : vector<1x32xf32> to vector<5x32xf32>
    %6 = arith.addf %3, %5 : vector<5x32xf32>
    %c0_6 = arith.constant 0 : index
    %c0_7 = arith.constant 0 : index
    %7 = vector.load %arg4[%c0_6, %c0_7] : memref<5x32xf32, #tpu.memory_space<vmem>>, vector<5x32xf32>
    %8 = arith.addf %6, %7 : vector<5x32xf32>
    %c0_8 = arith.constant 0 : index
    %c0_9 = arith.constant 0 : index
    %c0_10 = arith.constant 0 : index
    %9 = vector.load %arg5[%c0_8, %c0_9, %c0_10] : memref<1x5x32xf32, #tpu.memory_space<vmem>>, vector<1x5x32xf32>
    %10 = vector.shape_cast %9 : vector<1x5x32xf32> to vector<5x32xf32>
    %11 = vector.shape_cast %8 : vector<5x32xf32> to vector<1x5x32xf32>
    tpu.vector_store %arg5[%c0_8, %c0_9, %c0_10], %11 {strides = array<i32>} : memref<1x5x32xf32, #tpu.memory_space<vmem>>, vector<1x5x32xf32>,
    return
  }
  func.func @transform_0(%arg0: i32) -> (i32, i32, i32) {
    %c0_i32 = arith.constant 0 : i32
    %c0_i32_0 = arith.constant 0 : i32
    %c0_i32_1 = arith.constant 0 : i32
    return %arg0, %c0_i32, %c0_i32_0 : i32, i32, i32
  }
  func.func @transform_1(%arg0: i32) -> (i32, i32) {
    %c0_i32 = arith.constant 0 : i32
    %c0_i32_0 = arith.constant 0 : i32
    %c0_i32_1 = arith.constant 0 : i32
    return %c0_i32, %c0_i32_0 : i32, i32
  }
  func.func @transform_2(%arg0: i32) -> (i32, i32) {
    %c0_i32 = arith.constant 0 : i32
    %c0_i32_0 = arith.constant 0 : i32
    %c0_i32_1 = arith.constant 0 : i32
    return %c0_i32, %c0_i32_0 : i32, i32
  }
  func.func @transform_3(%arg0: i32) -> (i32, i32) {
    %c0_i32 = arith.constant 0 : i32
    %c0_i32_0 = arith.constant 0 : i32
    %c0_i32_1 = arith.constant 0 : i32
    return %c0_i32, %c0_i32_0 : i32, i32
  }
  func.func @transform_4(%arg0: i32) -> (i32, i32, i32) {
    %c0_i32 = arith.constant 0 : i32
    %c0_i32_0 = arith.constant 0 : i32
    %c0_i32_1 = arith.constant 0 : i32
    return %arg0, %c0_i32, %c0_i32_0 : i32, i32, i32
  }
}

</mosaic_0001>

<llo_original>
// kernel: tpu_custom_call.1
$region0: #{tpu_custom_call.1}
  #allocation0 [shape = 'u32[]', space=smem, size = 0x4, offset = 0x4, fixed_abs, tag = 'smem constant byte address 0x4 - core index']
  #allocation1 [shape = 'u32[144,128]{1,0:T(1,128)}', space=vmem, size = 0x12000, scoped, tag = 'internal scratch']
  %s0 = inlined_call_operand.vmem [shape: bf16[2,5,768], index: 0, kind: input, shape index: {}]
  %s1 = inlined_call_operand.vmem [shape: bf16[768,32], index: 1, kind: input, shape index: {}]
  %s2 = inlined_call_operand.vmem [shape: f32[1,32], index: 2, kind: input, shape index: {}]
  %s3 = inlined_call_operand.vmem [shape: f32[5,32], index: 3, kind: input, shape index: {}]
  %s4 = inlined_call_operand.vmem [shape: f32[2,5,32], index: 4, kind: output, shape index: {}]
  %s5 = sld [smem:[#allocation0]]
  $region49: #{tpu_custom_call.1} parent=0
    _
  %s7 = ssub.s32 1, %s5
  %s8 = scalar_select 0, %s7, %s5
  loop: start=0, step=1, limit=4
  $region2: #{tpu_custom_call.1} parent=0 // loop_pre_header
    _
  $region3: #{tpu_custom_call.1} parent=0 // loop_header
    %s10 = sphi 0, %s14
    %p11 = scmp.ge.s32.totalorder %s10, 4
    %s20 = sphi 0, %s22
    %s23 = sphi 0, %s20
    %s24 = sphi 0, %s23
    %s40 = sphi 0, %s24
    %s44 = sphi 0, %s44
    %s46 = sphi 0, %s44
    %s47 = sphi 0, %s46
    %s61 = sphi 0, %s47
    %s65 = sphi 0, %s65
    %s67 = sphi 0, %s65
    %s68 = sphi 0, %s67
    %s82 = sphi 0, %s68
    %s86 = sphi 0, %s86
    %s88 = sphi 0, %s86
    %s89 = sphi 0, %s88
    %s103 = sphi 0, %s89
    %s109 = sphi 0, %s111
    %s112 = sphi 0, %s109
    %s113 = sphi 0, %s112
    %s129 = sphi 0, %s113
  $region4: #{tpu_custom_call.1} parent=0 // loop_header_branch
    %13 = sbr.rel (%p11) target = $region8
  $region5: #{tpu_custom_call.1} parent=0 // loop_body
    %s15 = ssub.s32 %s10, 1
    %s16 = ssub.s32 %s10, 2
    %s17 = sadd.s32 %s10, 1
    %s18 = ssub.s32 %s10, %s17
    %p19 = scmp.eq.s32.totalorder %s18, 0
    %s21 = sadd.s32 %s20, 1
    %s22 = scalar_select %p19, %s20, %s21
    %p25 = pneg %p19
    %p26 = scmp.eq.s32.totalorder %s10, 1
    %p27 = por %p25, %p26
    %p28 = scmp.ne.s32.totalorder %s20, %s23
    %p29 = scmp.eq.s32.totalorder %s10, 0
    %p30 = por %p28, %p29
    %p31 = scmp.ne.s32.totalorder %s20, %s23
    %p32 = scmp.eq.s32.totalorder %s15, 1
    %p33 = por %p31, %p32
    %p34 = scmp.ne.s32.totalorder %s23, %s24
    %p35 = scmp.eq.s32.totalorder %s15, 0
    %p36 = por %p34, %p35
    %p37 = scmp.ne.s32.totalorder %s23, %s24
    %p38 = scmp.eq.s32.totalorder %s16, 1
    %p39 = por %p37, %p38
    %p41 = scmp.ne.s32.totalorder %s24, %s40
    %p42 = scmp.eq.s32.totalorder %s16, 0
    %p43 = por %p41, %p42
    %s45 = sadd.s32 %s44, 1
    %p48 = scmp.eq.s32.totalorder %s10, 1
    %p49 = scmp.ne.s32.totalorder %s44, %s46
    %p50 = scmp.eq.s32.totalorder %s10, 0
    %p51 = por %p49, %p50
    %p52 = scmp.ne.s32.totalorder %s44, %s46
    %p53 = scmp.eq.s32.totalorder %s15, 1
    %p54 = por %p52, %p53
    %p55 = scmp.ne.s32.totalorder %s46, %s47
    %p56 = scmp.eq.s32.totalorder %s15, 0
    %p57 = por %p55, %p56
    %p58 = scmp.ne.s32.totalorder %s46, %s47
    %p59 = scmp.eq.s32.totalorder %s16, 1
    %p60 = por %p58, %p59
    %p62 = scmp.ne.s32.totalorder %s47, %s61
    %p63 = scmp.eq.s32.totalorder %s16, 0
    %p64 = por %p62, %p63
    %s66 = sadd.s32 %s65, 1
    %p69 = scmp.eq.s32.totalorder %s10, 1
    %p70 = scmp.ne.s32.totalorder %s65, %s67
    %p71 = scmp.eq.s32.totalorder %s10, 0
    %p72 = por %p70, %p71
    %p73 = scmp.ne.s32.totalorder %s65, %s67
    %p74 = scmp.eq.s32.totalorder %s15, 1
    %p75 = por %p73, %p74
    %p76 = scmp.ne.s32.totalorder %s67, %s68
    %p77 = scmp.eq.s32.totalorder %s15, 0
    %p78 = por %p76, %p77
    %p79 = scmp.ne.s32.totalorder %s67, %s68
    %p80 = scmp.eq.s32.totalorder %s16, 1
    %p81 = por %p79, %p80
    %p83 = scmp.ne.s32.totalorder %s68, %s82
    %p84 = scmp.eq.s32.totalorder %s16, 0
    %p85 = por %p83, %p84
    %s87 = sadd.s32 %s86, 1
    %p90 = scmp.eq.s32.totalorder %s10, 1
    %p91 = scmp.ne.s32.totalorder %s86, %s88
    %p92 = scmp.eq.s32.totalorder %s10, 0
    %p93 = por %p91, %p92
    %p94 = scmp.ne.s32.totalorder %s86, %s88
    %p95 = scmp.eq.s32.totalorder %s15, 1
    %p96 = por %p94, %p95
    %p97 = scmp.ne.s32.totalorder %s88, %s89
    %p98 = scmp.eq.s32.totalorder %s15, 0
    %p99 = por %p97, %p98
    %p100 = scmp.ne.s32.totalorder %s88, %s89
    %p101 = scmp.eq.s32.totalorder %s16, 1
    %p102 = por %p100, %p101
    %p104 = scmp.ne.s32.totalorder %s89, %s103
    %p105 = scmp.eq.s32.totalorder %s16, 0
    %p106 = por %p104, %p105
    %s107 = ssub.s32 %s10, %s17
    %p108 = scmp.eq.s32.totalorder %s107, 0
    %s110 = sadd.s32 %s109, 1
    %s111 = scalar_select %p108, %s109, %s110
    %p114 = pneg %p108
    %p115 = scmp.eq.s32.totalorder %s10, 1
    %p116 = por %p114, %p115
    %p117 = scmp.ne.s32.totalorder %s109, %s112
    %p118 = scmp.eq.s32.totalorder %s10, 0
    %p119 = por %p117, %p118
    %p120 = scmp.ne.s32.totalorder %s109, %s112
    %p121 = scmp.eq.s32.totalorder %s15, 1
    %p122 = por %p120, %p121
    %p123 = scmp.ne.s32.totalorder %s112, %s113
    %p124 = scmp.eq.s32.totalorder %s15, 0
    %p125 = por %p123, %p124
    %p126 = scmp.ne.s32.totalorder %s112, %s113
    %p127 = scmp.eq.s32.totalorder %s16, 1
    %p128 = por %p126, %p127
    %p130 = scmp.ne.s32.totalorder %s113, %s129
    %p131 = scmp.eq.s32.totalorder %s16, 0
    %p132 = por %p130, %p131
    %p133 = scmp.le.s32.totalorder 1, %s10
    %p134 = scmp.lt.s32.totalorder %s10, 3
    %p135 = pnand %p133, %p134
    %p136 = pneg %p135
    // Predicated region
    $region9: #{tpu_custom_call.1} parent=5 // pred_check
      _
    $region10: #{tpu_custom_call.1} parent=5 // pred_check_branch
      %138 = sbr.rel (%p135) target = $region12
    $region11: #{tpu_custom_call.1} parent=5 // pred_region
      %s139 = ssub.s32 %s10, 1
      // Predicated region
      $region13: #{tpu_custom_call.1} parent=11 // pred_check
        %p140 = pneg %p57
      $region14: #{tpu_custom_call.1} parent=11 // pred_check_branch
        %142 = sbr.rel (%p140) target = $region16
      $region15: #{tpu_custom_call.1} parent=11 // pred_region
        _
      $region16: #{tpu_custom_call.1} parent=11 // pred_fallthru
        _
      // Predicated region
      $region17: #{tpu_custom_call.1} parent=11 // pred_check
        %p143 = pneg %p78
      $region18: #{tpu_custom_call.1} parent=11 // pred_check_branch
        %145 = sbr.rel (%p143) target = $region20
      $region19: #{tpu_custom_call.1} parent=11 // pred_region
        _
      $region20: #{tpu_custom_call.1} parent=11 // pred_fallthru
        _
      // Predicated region
      $region21: #{tpu_custom_call.1} parent=11 // pred_check
        %p146 = pneg %p99
      $region22: #{tpu_custom_call.1} parent=11 // pred_check_branch
        %148 = sbr.rel (%p146) target = $region24
      $region23: #{tpu_custom_call.1} parent=11 // pred_region
        _
      $region24: #{tpu_custom_call.1} parent=11 // pred_fallthru
        _
    $region12: #{tpu_custom_call.1} parent=5 // pred_fallthru
      _
    %p149 = scmp.lt.s32.totalorder %s10, 2
    // Predicated region
    $region25: #{tpu_custom_call.1} parent=5 // pred_check
      %p150 = pneg %p149
    $region26: #{tpu_custom_call.1} parent=5 // pred_check_branch
      %152 = sbr.rel (%p150) target = $region28
    $region27: #{tpu_custom_call.1} parent=5 // pred_region
      // Predicated region
      $region29: #{tpu_custom_call.1} parent=27 // pred_check
        %p153 = pneg %p30
      $region30: #{tpu_custom_call.1} parent=27 // pred_check_branch
        %155 = sbr.rel (%p153) target = $region32
      $region31: #{tpu_custom_call.1} parent=27 // pred_region
        %p156 = scmp.lt.s32.totalorder %s10, 1
        %s157 = scalar_select %p156, %s10, 1
        %s158 = smul.addr %s157, 6
        %s159 = smul.addr %s158, 4
        %s160 = scalar_lea.vmem %s0, %s159
      $region32: #{tpu_custom_call.1} parent=27 // pred_fallthru
        _
    $region28: #{tpu_custom_call.1} parent=5 // pred_fallthru
      _
    %p161 = scmp.le.s32.totalorder 1, %s10
    %p162 = scmp.lt.s32.totalorder %s10, 3
    %p163 = pnand %p161, %p162
    %p164 = pneg %p163
    // Predicated region
    $region33: #{tpu_custom_call.1} parent=5 // pred_check
      _
    $region34: #{tpu_custom_call.1} parent=5 // pred_check_branch
      %166 = sbr.rel (%p163) target = $region36
    $region35: #{tpu_custom_call.1} parent=5 // pred_region
      %s167 = ssub.s32 %s10, 1
      %p168 = scmp.lt.s32.totalorder %s15, 1
      %s169 = scalar_select %p168, %s15, 1
      %s170 = smul.addr %s169, 6
      %s171 = smul.addr %s170, 4
      %s172 = scalar_lea.vmem %s0, %s171
      %p173 = pneg %p36
      %p174 = pneg %p33
      %p175 = pneg %p57
      %p176 = pneg %p54
      %p177 = pneg %p78
      %p178 = pneg %p75
      %p179 = pneg %p99
      %p180 = pneg %p96
      %p181 = pneg %p125
      %p182 = pneg %p122
      %p183 = scmp.lt.s32.totalorder %s15, 1
      %s184 = scalar_select %p183, %s15, 1
      %s185 = smul.addr %s184, 8
      %s186 = scalar_lea.vmem %s4, %s185
      %p187 = scmp.lt.s32.totalorder %s15, 1
      %s188 = scalar_select %p187, %s15, 1
      %s189 = smul.addr %s188, 6
      %s190 = smul.addr %s189, 4
      %s191 = scalar_lea.vmem %s0, %s190
      %p192 = scmp.lt.s32.totalorder %s15, 1
      %s193 = scalar_select %p192, %s15, 1
      %s194 = smul.addr %s193, 8
      %s195 = scalar_lea.vmem %s4, %s194
      %v197 = vld [vmem:[%s191] sm:$0x77]
      %v198 = vld [vmem:[%s191 + $0x8] sm:$0x77]
      %v199 = vld [vmem:[%s191 + $0x10] sm:$0x77]
      %v200 = vld [vmem:[%s1] sm:$0xf]
      %v201 = vld [vmem:[%s1 + $0x4] sm:$0xf]
      %v202 = vld [vmem:[%s1 + $0x8] sm:$0xf]
      %v203 = vld [vmem:[%s1 + $0xc] sm:$0xf]
      %v204 = vld [vmem:[%s1 + $0x10] sm:$0xf]
      %v205 = vld [vmem:[%s1 + $0x14] sm:$0xf]
      %v206 = vld [vmem:[%s1 + $0x18] sm:$0xf]
      %v207 = vld [vmem:[%s1 + $0x1c] sm:$0xf]
      %v208 = vld [vmem:[%s1 + $0x20] sm:$0xf]
      %v209 = vld [vmem:[%s1 + $0x24] sm:$0xf]
      %v210 = vld [vmem:[%s1 + $0x28] sm:$0xf]
      %v211 = vld [vmem:[%s1 + $0x2c] sm:$0xf]
      %v212 = vld [vmem:[%s1 + $0x30] sm:$0xf]
      %v213 = vld [vmem:[%s1 + $0x34] sm:$0xf]
      %v214 = vld [vmem:[%s1 + $0x38] sm:$0xf]
      %v215 = vld [vmem:[%s1 + $0x3c] sm:$0xf]
      %v216 = vld [vmem:[%s1 + $0x40] sm:$0xf]
      %v217 = vld [vmem:[%s1 + $0x44] sm:$0xf]
      %v218 = vld [vmem:[%s1 + $0x48] sm:$0xf]
      %v219 = vld [vmem:[%s1 + $0x4c] sm:$0xf]
      %v220 = vld [vmem:[%s1 + $0x50] sm:$0xf]
      %v221 = vld [vmem:[%s1 + $0x54] sm:$0xf]
      %v222 = vld [vmem:[%s1 + $0x58] sm:$0xf]
      %v223 = vld [vmem:[%s1 + $0x5c] sm:$0xf]
      %v224 = vld [vmem:[%s1 + $0x60] sm:$0xf]
      %v225 = vld [vmem:[%s1 + $0x64] sm:$0xf]
      %v226 = vld [vmem:[%s1 + $0x68] sm:$0xf]
      %v227 = vld [vmem:[%s1 + $0x6c] sm:$0xf]
      %v228 = vld [vmem:[%s1 + $0x70] sm:$0xf]
      %v229 = vld [vmem:[%s1 + $0x74] sm:$0xf]
      %v230 = vld [vmem:[%s1 + $0x78] sm:$0xf]
      %v231 = vld [vmem:[%s1 + $0x7c] sm:$0xf]
      %v232 = vld [vmem:[%s1 + $0x80] sm:$0xf]
      %v233 = vld [vmem:[%s1 + $0x84] sm:$0xf]
      %v234 = vld [vmem:[%s1 + $0x88] sm:$0xf]
      %v235 = vld [vmem:[%s1 + $0x8c] sm:$0xf]
      %v236 = vld [vmem:[%s1 + $0x90] sm:$0xf]
      %v237 = vld [vmem:[%s1 + $0x94] sm:$0xf]
      %v238 = vld [vmem:[%s1 + $0x98] sm:$0xf]
      %v239 = vld [vmem:[%s1 + $0x9c] sm:$0xf]
      %v240 = vld [vmem:[%s1 + $0xa0] sm:$0xf]
      %v241 = vld [vmem:[%s1 + $0xa4] sm:$0xf]
      %v242 = vld [vmem:[%s1 + $0xa8] sm:$0xf]
      %v243 = vld [vmem:[%s1 + $0xac] sm:$0xf]
      %v244 = vld [vmem:[%s1 + $0xb0] sm:$0xf]
      %v245 = vld [vmem:[%s1 + $0xb4] sm:$0xf]
      %v246 = vld [vmem:[%s1 + $0xb8] sm:$0xf]
      %v247 = vld [vmem:[%s1 + $0xbc] sm:$0xf]
      %v248 = vld [vmem:[%s1 + $0xc0] sm:$0xf]
      %v249 = vld [vmem:[%s1 + $0xc4] sm:$0xf]
      %v250 = vld [vmem:[%s1 + $0xc8] sm:$0xf]
      %v251 = vld [vmem:[%s1 + $0xcc] sm:$0xf]
      %v252 = vld [vmem:[%s1 + $0xd0] sm:$0xf]
      %v253 = vld [vmem:[%s1 + $0xd4] sm:$0xf]
      %v254 = vld [vmem:[%s1 + $0xd8] sm:$0xf]
      %v255 = vld [vmem:[%s1 + $0xdc] sm:$0xf]
      %v256 = vld [vmem:[%s1 + $0xe0] sm:$0xf]
      %v257 = vld [vmem:[%s1 + $0xe4] sm:$0xf]
      %v258 = vld [vmem:[%s1 + $0xe8] sm:$0xf]
      %v259 = vld [vmem:[%s1 + $0xec] sm:$0xf]
      %v260 = vld [vmem:[%s1 + $0xf0] sm:$0xf]
      %v261 = vld [vmem:[%s1 + $0xf4] sm:$0xf]
      %v262 = vld [vmem:[%s1 + $0xf8] sm:$0xf]
      %v263 = vld [vmem:[%s1 + $0xfc] sm:$0xf]
      %v264 = vld [vmem:[%s1 + $0x100] sm:$0xf]
      %v265 = vld [vmem:[%s1 + $0x104] sm:$0xf]
      %v266 = vld [vmem:[%s1 + $0x108] sm:$0xf]
      %v267 = vld [vmem:[%s1 + $0x10c] sm:$0xf]
      %v268 = vld [vmem:[%s1 + $0x110] sm:$0xf]
      %v269 = vld [vmem:[%s1 + $0x114] sm:$0xf]
      %v270 = vld [vmem:[%s1 + $0x118] sm:$0xf]
      %v271 = vld [vmem:[%s1 + $0x11c] sm:$0xf]
      %v272 = vld [vmem:[%s1 + $0x120] sm:$0xf]
      %v273 = vld [vmem:[%s1 + $0x124] sm:$0xf]
      %v274 = vld [vmem:[%s1 + $0x128] sm:$0xf]
      %v275 = vld [vmem:[%s1 + $0x12c] sm:$0xf]
      %v276 = vld [vmem:[%s1 + $0x130] sm:$0xf]
      %v277 = vld [vmem:[%s1 + $0x134] sm:$0xf]
      %v278 = vld [vmem:[%s1 + $0x138] sm:$0xf]
      %v279 = vld [vmem:[%s1 + $0x13c] sm:$0xf]
      %v280 = vld [vmem:[%s1 + $0x140] sm:$0xf]
      %v281 = vld [vmem:[%s1 + $0x144] sm:$0xf]
      %v282 = vld [vmem:[%s1 + $0x148] sm:$0xf]
      %v283 = vld [vmem:[%s1 + $0x14c] sm:$0xf]
      %v284 = vld [vmem:[%s1 + $0x150] sm:$0xf]
      %v285 = vld [vmem:[%s1 + $0x154] sm:$0xf]
      %v286 = vld [vmem:[%s1 + $0x158] sm:$0xf]
      %v287 = vld [vmem:[%s1 + $0x15c] sm:$0xf]
      %v288 = vld [vmem:[%s1 + $0x160] sm:$0xf]
      %v289 = vld [vmem:[%s1 + $0x164] sm:$0xf]
      %v290 = vld [vmem:[%s1 + $0x168] sm:$0xf]
      %v291 = vld [vmem:[%s1 + $0x16c] sm:$0xf]
      %v292 = vld [vmem:[%s1 + $0x170] sm:$0xf]
      %v293 = vld [vmem:[%s1 + $0x174] sm:$0xf]
      %v294 = vld [vmem:[%s1 + $0x178] sm:$0xf]
      %v295 = vld [vmem:[%s1 + $0x17c] sm:$0xf]
      %v296 = vld [vmem:[%s2] sm:$0x1]
      %v298 = vlaneseq
      %v299 = vshrl.u32 %v298, 7
      %v300 = vsub.s32 0, %v299
      %v301 = vrot.slane %v296, %v300
      %v306 = vunpack.c.l.b16 %v197
      %v307 = vunpack.c.h.b16 %v197
      %v308 = vunpack.c.l.b16 %v198
      %v309 = vunpack.c.h.b16 %v198
      %v310 = vunpack.c.l.b16 %v199
      %v311 = vunpack.c.h.b16 %v199
      %v312 = vpack.c.b16 %v306, %v306
      %v313 = vpack.c.b16 %v307, %v307
      %v314 = vpack.c.b16 %v308, %v308
      %v315 = vpack.c.b16 %v309, %v309
      %v316 = vpack.c.b16 %v310, %v310
      %v317 = vpack.c.b16 %v311, %v311
      %v420 = vunpack.c.l.b16 %v200
      %v421 = vunpack.c.l.b16 %v201
      %v422 = vunpack.c.l.b16 %v202
      %v423 = vunpack.c.l.b16 %v203
      %v424 = vunpack.c.l.b16 %v204
      %v425 = vunpack.c.l.b16 %v205
      %v426 = vunpack.c.l.b16 %v206
      %v427 = vunpack.c.l.b16 %v207
      %v428 = vunpack.c.l.b16 %v208
      %v429 = vunpack.c.l.b16 %v209
      %v430 = vunpack.c.l.b16 %v210
      %v431 = vunpack.c.l.b16 %v211
      %v432 = vunpack.c.l.b16 %v212
      %v433 = vunpack.c.l.b16 %v213
      %v434 = vunpack.c.l.b16 %v214
      %v435 = vunpack.c.l.b16 %v215
      %v436 = vunpack.c.l.b16 %v216
      %v437 = vunpack.c.l.b16 %v217
      %v438 = vunpack.c.l.b16 %v218
      %v439 = vunpack.c.l.b16 %v219
      %v440 = vunpack.c.l.b16 %v220
      %v441 = vunpack.c.l.b16 %v221
      %v442 = vunpack.c.l.b16 %v222
      %v443 = vunpack.c.l.b16 %v223
      %v444 = vunpack.c.l.b16 %v224
      %v445 = vunpack.c.l.b16 %v225
      %v446 = vunpack.c.l.b16 %v226
      %v447 = vunpack.c.l.b16 %v227
      %v448 = vunpack.c.l.b16 %v228
      %v449 = vunpack.c.l.b16 %v229
      %v450 = vunpack.c.l.b16 %v230
      %v451 = vunpack.c.l.b16 %v231
      %v452 = vunpack.c.l.b16 %v232
      %v453 = vunpack.c.l.b16 %v233
      %v454 = vunpack.c.l.b16 %v234
      %v455 = vunpack.c.l.b16 %v235
      %v456 = vunpack.c.l.b16 %v236
      %v457 = vunpack.c.l.b16 %v237
      %v458 = vunpack.c.l.b16 %v238
      %v459 = vunpack.c.l.b16 %v239
      %v460 = vunpack.c.l.b16 %v240
      %v461 = vunpack.c.l.b16 %v241
      %v462 = vunpack.c.l.b16 %v242
      %v463 = vunpack.c.l.b16 %v243
      %v464 = vunpack.c.l.b16 %v244
      %v465 = vunpack.c.l.b16 %v245
      %v466 = vunpack.c.l.b16 %v246
      %v467 = vunpack.c.l.b16 %v247
      %v468 = vunpack.c.l.b16 %v248
      %v469 = vunpack.c.l.b16 %v249
      %v470 = vunpack.c.l.b16 %v250
      %v471 = vunpack.c.l.b16 %v251
      %v472 = vunpack.c.l.b16 %v252
      %v473 = vunpack.c.l.b16 %v253
      %v474 = vunpack.c.l.b16 %v254
      %v475 = vunpack.c.l.b16 %v255
      %v476 = vunpack.c.l.b16 %v256
      %v477 = vunpack.c.l.b16 %v257
      %v478 = vunpack.c.l.b16 %v258
      %v479 = vunpack.c.l.b16 %v259
      %v480 = vunpack.c.l.b16 %v260
      %v481 = vunpack.c.l.b16 %v261
      %v482 = vunpack.c.l.b16 %v262
      %v483 = vunpack.c.l.b16 %v263
      %v484 = vunpack.c.l.b16 %v264
      %v485 = vunpack.c.l.b16 %v265
      %v486 = vunpack.c.l.b16 %v266
      %v487 = vunpack.c.l.b16 %v267
      %v488 = vunpack.c.l.b16 %v268
      %v489 = vunpack.c.l.b16 %v269
      %v490 = vunpack.c.l.b16 %v270
      %v491 = vunpack.c.l.b16 %v271
      %v492 = vunpack.c.l.b16 %v272
      %v493 = vunpack.c.l.b16 %v273
      %v494 = vunpack.c.l.b16 %v274
      %v495 = vunpack.c.l.b16 %v275
      %v496 = vunpack.c.l.b16 %v276
      %v497 = vunpack.c.l.b16 %v277
      %v498 = vunpack.c.l.b16 %v278
      %v499 = vunpack.c.l.b16 %v279
      %v500 = vunpack.c.l.b16 %v280
      %v501 = vunpack.c.l.b16 %v281
      %v502 = vunpack.c.l.b16 %v282
      %v503 = vunpack.c.l.b16 %v283
      %v504 = vunpack.c.l.b16 %v284
      %v505 = vunpack.c.l.b16 %v285
      %v506 = vunpack.c.l.b16 %v286
      %v507 = vunpack.c.l.b16 %v287
      %v508 = vunpack.c.l.b16 %v288
      %v509 = vunpack.c.l.b16 %v289
      %v510 = vunpack.c.l.b16 %v290
      %v511 = vunpack.c.l.b16 %v291
      %v512 = vunpack.c.l.b16 %v292
      %v513 = vunpack.c.l.b16 %v293
      %v514 = vunpack.c.l.b16 %v294
      %v515 = vunpack.c.l.b16 %v295
      %v516 = vpack.c.b16 %v421, %v420
      %v517 = vpack.c.b16 %v423, %v422
      %v518 = vpack.c.b16 %v425, %v424
      %v519 = vpack.c.b16 %v427, %v426
      %v520 = vpack.c.b16 %v429, %v428
      %v521 = vpack.c.b16 %v431, %v430
      %v522 = vpack.c.b16 %v433, %v432
      %v523 = vpack.c.b16 %v435, %v434
      %v524 = vpack.c.b16 %v437, %v436
      %v525 = vpack.c.b16 %v439, %v438
      %v526 = vpack.c.b16 %v441, %v440
      %v527 = vpack.c.b16 %v443, %v442
      %v528 = vpack.c.b16 %v445, %v444
      %v529 = vpack.c.b16 %v447, %v446
      %v530 = vpack.c.b16 %v449, %v448
      %v531 = vpack.c.b16 %v451, %v450
      %v532 = vpack.c.b16 %v453, %v452
      %v533 = vpack.c.b16 %v455, %v454
      %v534 = vpack.c.b16 %v457, %v456
      %v535 = vpack.c.b16 %v459, %v458
      %v536 = vpack.c.b16 %v461, %v460
      %v537 = vpack.c.b16 %v463, %v462
      %v538 = vpack.c.b16 %v465, %v464
      %v539 = vpack.c.b16 %v467, %v466
      %v540 = vpack.c.b16 %v469, %v468
      %v541 = vpack.c.b16 %v471, %v470
      %v542 = vpack.c.b16 %v473, %v472
      %v543 = vpack.c.b16 %v475, %v474
      %v544 = vpack.c.b16 %v477, %v476
      %v545 = vpack.c.b16 %v479, %v478
      %v546 = vpack.c.b16 %v481, %v480
      %v547 = vpack.c.b16 %v483, %v482
      %v548 = vpack.c.b16 %v485, %v484
      %v549 = vpack.c.b16 %v487, %v486
      %v550 = vpack.c.b16 %v489, %v488
      %v551 = vpack.c.b16 %v491, %v490
      %v552 = vpack.c.b16 %v493, %v492
      %v553 = vpack.c.b16 %v495, %v494
      %v554 = vpack.c.b16 %v497, %v496
      %v555 = vpack.c.b16 %v499, %v498
      %v556 = vpack.c.b16 %v501, %v500
      %v557 = vpack.c.b16 %v503, %v502
      %v558 = vpack.c.b16 %v505, %v504
      %v559 = vpack.c.b16 %v507, %v506
      %v560 = vpack.c.b16 %v509, %v508
      %v561 = vpack.c.b16 %v511, %v510
      %v562 = vpack.c.b16 %v513, %v512
      %v563 = vpack.c.b16 %v515, %v514
      %612 = vmatprep.subr.bf16.mxu0 0
      %613 = vmatpush1.bf16.msra.mxu0 %v523
      %614 = vmatprep.subr.bf16.mxu0 0
      %615 = vmatpush1.bf16.msra.mxu0 %v522
      %616 = vmatprep.subr.bf16.mxu0 0
      %617 = vmatpush1.bf16.msra.mxu0 %v521
      %618 = vmatprep.subr.bf16.mxu0 0
      %619 = vmatpush1.bf16.msra.mxu0 %v520
      %620 = vmatprep.subr.bf16.mxu0 0
      %621 = vmatpush1.bf16.msra.mxu0 %v519
      %622 = vmatprep.subr.bf16.mxu0 0
      %623 = vmatpush1.bf16.msra.mxu0 %v518
      %624 = vmatprep.subr.bf16.mxu0 0
      %625 = vmatpush1.bf16.msra.mxu0 %v517
      %626 = vmatprep.subr.bf16.mxu0 0
      %627 = vmatpush1.bf16.msra.mxu0 %v516
      %628 = vmatprep.subr.bf16.mxu0 0
      %629 = vmatpush2.bf16.msra.mxu0 %v531
      %630 = vmatprep.subr.bf16.mxu0 0
      %631 = vmatpush2.bf16.msra.mxu0 %v530
      %632 = vmatprep.subr.bf16.mxu0 0
      %633 = vmatpush2.bf16.msra.mxu0 %v529
      %634 = vmatprep.subr.bf16.mxu0 0
      %635 = vmatpush2.bf16.msra.mxu0 %v528
      %636 = vmatprep.subr.bf16.mxu0 0
      %637 = vmatpush2.bf16.msra.mxu0 %v527
      %638 = vmatprep.subr.bf16.mxu0 0
      %639 = vmatpush2.bf16.msra.mxu0 %v526
      %640 = vmatprep.subr.bf16.mxu0 0
      %641 = vmatpush2.bf16.msra.mxu0 %v525
      %642 = vmatprep.subr.bf16.mxu0 0
      %643 = vmatpush2.bf16.msra.mxu0 %v524
      %644 = vmatprep.mubr.bf16.mxu0 %v313
      %645 = vmatmul.mubr.bf16.gmra.mxu0 %v312
      %v646 = vpop.f32.mrf.mxu0
      %v647 = vadd.f32 %v301, %v646
      %v648 = vpop.f32.mrf.mxu0
      %v649 = vpop.f32.mrf.mxu0
      %v650 = vpop.f32.mrf.mxu0
      %651 = vdwg.mxu0
      %652 = vmatprep.subr.bf16.mxu0 0
      %653 = vmatpush1.bf16.msra.mxu0 %v539
      %654 = vmatprep.subr.bf16.mxu0 0
      %655 = vmatpush1.bf16.msra.mxu0 %v538
      %656 = vmatprep.subr.bf16.mxu0 0
      %657 = vmatpush1.bf16.msra.mxu0 %v537
      %658 = vmatprep.subr.bf16.mxu0 0
      %659 = vmatpush1.bf16.msra.mxu0 %v536
      %660 = vmatprep.subr.bf16.mxu0 0
      %661 = vmatpush1.bf16.msra.mxu0 %v535
      %662 = vmatprep.subr.bf16.mxu0 0
      %663 = vmatpush1.bf16.msra.mxu0 %v534
      %664 = vmatprep.subr.bf16.mxu0 0
      %665 = vmatpush1.bf16.msra.mxu0 %v533
      %666 = vmatprep.subr.bf16.mxu0 0
      %667 = vmatpush1.bf16.msra.mxu0 %v532
      %668 = vmatprep.subr.bf16.mxu0 0
      %669 = vmatpush2.bf16.msra.mxu0 %v547
      %670 = vmatprep.subr.bf16.mxu0 0
      %671 = vmatpush2.bf16.msra.mxu0 %v546
      %672 = vmatprep.subr.bf16.mxu0 0
      %673 = vmatpush2.bf16.msra.mxu0 %v545
      %674 = vmatprep.subr.bf16.mxu0 0
      %675 = vmatpush2.bf16.msra.mxu0 %v544
      %676 = vmatprep.subr.bf16.mxu0 0
      %677 = vmatpush2.bf16.msra.mxu0 %v543
      %678 = vmatprep.subr.bf16.mxu0 0
      %679 = vmatpush2.bf16.msra.mxu0 %v542
      %680 = vmatprep.subr.bf16.mxu0 0
      %681 = vmatpush2.bf16.msra.mxu0 %v541
      %682 = vmatprep.subr.bf16.mxu0 0
      %683 = vmatpush2.bf16.msra.mxu0 %v540
      %684 = vmatprep.mubr.bf16.mxu0 %v315
      %685 = vmatmul.mubr.bf16.gmra.mxu0 %v314
      %v686 = vpop.f32.mrf.mxu0
      %v687 = vadd.f32 %v647, %v686
      %v688 = vpop.f32.mrf.mxu0
      %v689 = vpop.f32.mrf.mxu0
      %v690 = vpop.f32.mrf.mxu0
      %691 = vdwg.mxu0
      %692 = vmatprep.subr.bf16.mxu0 0
      %693 = vmatpush1.bf16.msra.mxu0 %v555
      %694 = vmatprep.subr.bf16.mxu0 0
      %695 = vmatpush1.bf16.msra.mxu0 %v554
      %696 = vmatprep.subr.bf16.mxu0 0
      %697 = vmatpush1.bf16.msra.mxu0 %v553
      %698 = vmatprep.subr.bf16.mxu0 0
      %699 = vmatpush1.bf16.msra.mxu0 %v552
      %700 = vmatprep.subr.bf16.mxu0 0
      %701 = vmatpush1.bf16.msra.mxu0 %v551
      %702 = vmatprep.subr.bf16.mxu0 0
      %703 = vmatpush1.bf16.msra.mxu0 %v550
      %704 = vmatprep.subr.bf16.mxu0 0
      %705 = vmatpush1.bf16.msra.mxu0 %v549
      %706 = vmatprep.subr.bf16.mxu0 0
      %707 = vmatpush1.bf16.msra.mxu0 %v548
      %708 = vmatprep.subr.bf16.mxu0 0
      %709 = vmatpush2.bf16.msra.mxu0 %v563
      %710 = vmatprep.subr.bf16.mxu0 0
      %711 = vmatpush2.bf16.msra.mxu0 %v562
      %712 = vmatprep.subr.bf16.mxu0 0
      %713 = vmatpush2.bf16.msra.mxu0 %v561
      %714 = vmatprep.subr.bf16.mxu0 0
      %715 = vmatpush2.bf16.msra.mxu0 %v560
      %716 = vmatprep.subr.bf16.mxu0 0
      %717 = vmatpush2.bf16.msra.mxu0 %v559
      %718 = vmatprep.subr.bf16.mxu0 0
      %719 = vmatpush2.bf16.msra.mxu0 %v558
      %720 = vmatprep.subr.bf16.mxu0 0
      %721 = vmatpush2.bf16.msra.mxu0 %v557
      %722 = vmatprep.subr.bf16.mxu0 0
      %723 = vmatpush2.bf16.msra.mxu0 %v556
      %724 = vmatprep.mubr.bf16.mxu0 %v317
      %725 = vmatmul.mubr.bf16.gmra.mxu0 %v316
      %v726 = vpop.f32.mrf.mxu0
      %v727 = vadd.f32 %v687, %v726
      %v728 = vpop.f32.mrf.mxu0
      %v729 = vpop.f32.mrf.mxu0
      %v730 = vpop.f32.mrf.mxu0
      %731 = vdwg.mxu0
      %v732 = vld [vmem:[%s3] sm:$0x1f]
      %v733 = vadd.f32 %v727, %v732
      %vm734 = vcmask 258048
      %735 = vst.msk [vmem:[%s195] sm:$0x1f] %vm734, %v733
      %p736 = scmp.lt.s32.totalorder %s15, 1
      %s737 = scalar_select %p736, %s15, 1
      %s738 = smul.addr %s737, 8
      %s739 = scalar_lea.vmem %s4, %s738
      // Predicated region
      $region37: #{tpu_custom_call.1} parent=35 // pred_check
        %p740 = pneg %p122
      $region38: #{tpu_custom_call.1} parent=35 // pred_check_branch
        %742 = sbr.rel (%p740) target = $region40
      $region39: #{tpu_custom_call.1} parent=35 // pred_region
        _
      $region40: #{tpu_custom_call.1} parent=35 // pred_fallthru
        _
    $region36: #{tpu_custom_call.1} parent=5 // pred_fallthru
      _
    %p743 = scmp.le.s32.totalorder 2, %s10
    // Predicated region
    $region41: #{tpu_custom_call.1} parent=5 // pred_check
      %p744 = pneg %p743
    $region42: #{tpu_custom_call.1} parent=5 // pred_check_branch
      %746 = sbr.rel (%p744) target = $region44
    $region43: #{tpu_custom_call.1} parent=5 // pred_region
      %s747 = ssub.s32 %s10, 2
      // Predicated region
      $region45: #{tpu_custom_call.1} parent=43 // pred_check
        %p748 = pneg %p128
      $region46: #{tpu_custom_call.1} parent=43 // pred_check_branch
        %750 = sbr.rel (%p748) target = $region48
      $region47: #{tpu_custom_call.1} parent=43 // pred_region
        %p751 = scmp.lt.s32.totalorder %s16, 1
        %s752 = scalar_select %p751, %s16, 1
        %s753 = smul.addr %s752, 8
        %s754 = scalar_lea.vmem %s4, %s753
      $region48: #{tpu_custom_call.1} parent=43 // pred_fallthru
        _
    $region44: #{tpu_custom_call.1} parent=5 // pred_fallthru
      _
  $region6: #{tpu_custom_call.1} parent=0 // loop_footer
    %s14 = sadd.s32 1, %s10
  $region7: #{tpu_custom_call.1} parent=0 // loop_footer_branch
    %9 = sbr.rel target = $region3
  $region8: #{tpu_custom_call.1} parent=0 // loop_exit
    _

</llo_original>
